<compile_context>
chip_gen: v5e
topology: v5e:2x2
jax: 0.10.0
libtpu: 0.0.40
codegen_flags: <defaults>
</compile_context>

<pallas_src>
import jax
import jax.numpy as jnp
from jax import lax
from jax.experimental import pallas as pl
from jax.experimental.pallas import tpu as pltpu

GAMMA = 0.98
TD_LAMBDA = 0.95
STEP_TYPE_LAST = 2  # alf.data_structures.StepType.LAST


def _round_up(x, m):
    return ((x + m - 1) // m) * m


def _td_loss_kernel(reward_ref, step_type_ref, discount_ref, value_ref,
                    target_value_ref, loss_ref, b_ref, adv_ref):
    T, Bn = loss_ref.shape
    Tm1 = T - 1

    # ---- Vectorized (time-parallel) prologue: full-width vreg work,
    #      operands loaded straight from the VMEM input refs. ----
    disc_g = discount_ref[pl.ds(1, Tm1), :].astype(jnp.float32) * GAMMA
    tv_next = target_value_ref[pl.ds(1, Tm1), :].astype(jnp.float32)
    tv_cur = target_value_ref[pl.ds(0, Tm1), :].astype(jnp.float32)
    r_next = reward_ref[pl.ds(1, Tm1), :].astype(jnp.float32)
    delta = r_next + disc_g * tv_next - tv_cur                     # [T-1, Bn]
    mask = (step_type_ref[pl.ds(0, Tm1), :] != STEP_TYPE_LAST).astype(
        jnp.float32)                                               # [T-1, Bn]

    # Recursion coefficients: adv[t] = a[t] + b[t] * adv[t+1].
    # "a" goes straight into the adv scratch (in-place recursion, one less
    # VMEM slab than keeping it separate).
    adv_ref[pl.ds(0, Tm1), :] = mask * delta
    b_ref[...] = (TD_LAMBDA * mask) * disc_g

    # Row T-1 of adv is chosen so the epilogue produces exactly zero loss there
    # (tensor_extend_zero): err = adv + tv - v == 0.
    adv_ref[pl.ds(Tm1, 1), :] = (value_ref[pl.ds(Tm1, 1), :].astype(jnp.float32)
                                 - target_value_ref[pl.ds(Tm1, 1), :].astype(
                                     jnp.float32))

    # ---- Sequential backward-in-time recursion: 2 row loads + 1 FMA + 1 row
    #      store per step; carry lives in a register row. ----
    def body(i, adv_next):
        t = Tm1 - 1 - i
        adv = adv_ref[pl.ds(t, 1), :] + b_ref[pl.ds(t, 1), :] * adv_next
        adv_ref[pl.ds(t, 1), :] = adv
        return adv

    lax.fori_loop(0, Tm1, body, jnp.zeros((1, Bn), jnp.float32),
                  unroll=True if Tm1 <= 32 else 8)

    # ---- Vectorized epilogue: one lane-dense, unmasked full-slab store. ----
    err = (adv_ref[...] + target_value_ref[...].astype(jnp.float32)) \
        - value_ref[...].astype(jnp.float32)   # returns - value (returns detached)
    loss_ref[...] = err * err                  # element_wise_squared_loss


def _pick_block_b(T, B, max_block=4096, vmem_budget=8 * 1024 * 1024):
    """Largest lane-dense batch block whose double-buffered I/O + scratch fits
    comfortably inside the (smallest, v7x) scoped-VMEM budget."""
    bfull = _round_up(B, 128)
    # Per lane-column bytes inside the block:
    #   6 pipelined arrays (5 in + 1 out) x 2 buffers x T x 4B  +
    #   2 scratch slabs (~T rows each) x 4B
    per_lane = (12 * T + 2 * T) * 4
    cap = max(128, (vmem_budget // per_lane) // 128 * 128)
    return min(bfull, max_block, cap)


def td_loss(reward, step_type, discount, value, target_value):
    """All inputs time-major [T, B]; returns loss [T, B] (last row zeros)."""
    T, B = reward.shape

    # Lane-dense batch tiling: pad B to a multiple of the batch block size
    # (itself a multiple of 128 lanes) so every output store is an unmasked
    # vst and the grid divides evenly.
    bn = _pick_block_b(T, B)
    Bp = _round_up(B, bn)

    def pad(x):
        return x if Bp == B else jnp.pad(x, ((0, 0), (0, Bp - B)))

    args = (pad(reward), pad(step_type), pad(discount), pad(value),
            pad(target_value))

    spec = pl.BlockSpec((T, bn), lambda i: (0, i))
    out = pl.pallas_call(
        _td_loss_kernel,
        out_shape=jax.ShapeDtypeStruct((T, Bp), jnp.float32),
        grid_spec=pltpu.PrefetchScalarGridSpec(
            num_scalar_prefetch=0,
            grid=(Bp // bn,),
            in_specs=[spec] * 5,
            out_specs=spec,
            scratch_shapes=[
                pltpu.VMEM((T - 1, bn), jnp.float32),   # b = m*lambda*disc
                pltpu.VMEM((T, bn), jnp.float32),       # adv (a in-place)
            ]),
        compiler_params=pltpu.CompilerParams(
            dimension_semantics=("parallel",)),
    )(*args)
    return out[:, :B]


def td_loss_reference(reward, step_type, discount, value, target_value):
    """Pure-JAX reference mirroring alf.utils.value_ops + TDLoss.forward."""
    discounts = discount * GAMMA
    is_last = (step_type == STEP_TYPE_LAST).astype(jnp.float32)
    delta = reward[1:] + discounts[1:] * target_value[1:] - target_value[:-1]
    wd = discounts[1:] * TD_LAMBDA

    def scan_fn(adv_next, x):
        d, w, il = x
        adv = (1.0 - il) * (d + w * adv_next)
        return adv, adv

    _, advs_rev = lax.scan(scan_fn, jnp.zeros(reward.shape[1], jnp.float32),
                           (delta[::-1], wd[::-1], is_last[:-1][::-1]))
    advs = advs_rev[::-1]
    returns = advs + target_value[:-1]
    loss = (returns - value[:-1]) ** 2
    return jnp.concatenate([loss, jnp.zeros((1, loss.shape[1]), loss.dtype)], 0)


if __name__ == "__main__":
    T, B = 9, 8  # T time steps (unroll length + 1), batch 8
    key = jax.random.PRNGKey(0)
    k1, k2, k3, k4, k5 = jax.random.split(key, 5)

    reward = jax.random.normal(k1, (T, B), dtype=jnp.float32)
    value = jax.random.normal(k2, (T, B), dtype=jnp.float32)
    target_value = jax.random.normal(k3, (T, B), dtype=jnp.float32)
    discount = jax.random.uniform(k4, (T, B), dtype=jnp.float32,
                                  minval=0.0, maxval=1.0)
    # step types in {FIRST=0, MID=1, LAST=2}
    step_type = jax.random.randint(k5, (T, B), 0, 3, dtype=jnp.int32)

    loss = td_loss(reward, step_type, discount, value, target_value)
    jax.block_until_ready(loss)

    ref = td_loss_reference(reward, step_type, discount, value, target_value)
    assert loss.shape == (T, B)
    assert jnp.allclose(loss, ref, atol=1e-5, rtol=1e-5), "mismatch vs reference"

    # Also exercise a larger, multi-block batch to verify the grid path.
    T2, B2 = 17, 1000
    kk = jax.random.split(jax.random.PRNGKey(1), 5)
    rw = jax.random.normal(kk[0], (T2, B2), dtype=jnp.float32)
    vl = jax.random.normal(kk[1], (T2, B2), dtype=jnp.float32)
    tvl = jax.random.normal(kk[2], (T2, B2), dtype=jnp.float32)
    dc = jax.random.uniform(kk[3], (T2, B2), dtype=jnp.float32)
    st = jax.random.randint(kk[4], (T2, B2), 0, 3, dtype=jnp.int32)
    loss2 = td_loss(rw, st, dc, vl, tvl)
    jax.block_until_ready(loss2)
    ref2 = td_loss_reference(rw, st, dc, vl, tvl)
    assert jnp.allclose(loss2, ref2, atol=1e-5, rtol=1e-5), "mismatch (large)"

    # TODO(synk): normalize_target=True path (AdaptiveNormalizer running stats)
    # is stateful and off by default; not implemented in the kernel.
    # TODO(synk): multi-dim reward (reward.ndim == 3, per-dim gamma + mean over
    # dim 2) not implemented; default scalar-reward path only.
    print("KERNEL_OK")
</pallas_src>

<mosaic_0001>
module attributes {stable_mosaic.version = 11 : i64} {
  func.func @_td_loss_kernel(%arg0: i32, %arg1: memref<9x128xf32, #tpu.memory_space<vmem>>, %arg2: memref<9x128xi32, #tpu.memory_space<vmem>>, %arg3: memref<9x128xf32, #tpu.memory_space<vmem>>, %arg4: memref<9x128xf32, #tpu.memory_space<vmem>>, %arg5: memref<9x128xf32, #tpu.memory_space<vmem>>, %arg6: memref<9x128xf32, #tpu.memory_space<vmem>>, %arg7: memref<8x128xf32, #tpu.memory_space<vmem>>, %arg8: memref<9x128xf32, #tpu.memory_space<vmem>>) attributes {dimension_semantics = [#tpu.dimension_semantics<parallel>], iteration_bounds = array<i64: 1>, scalar_prefetch = 0 : i64, scratch_operands = 2 : i64, tpu.core_type = #tpu.core_type<tc>, window_params = [{transform_indices = @transform_0, window_bounds = array<i64: 9, 128>}, {transform_indices = @transform_1, window_bounds = array<i64: 9, 128>}, {transform_indices = @transform_2, window_bounds = array<i64: 9, 128>}, {transform_indices = @transform_3, window_bounds = array<i64: 9, 128>}, {transform_indices = @transform_4, window_bounds = array<i64: 9, 128>}, {transform_indices = @transform_5, window_bounds = array<i64: 9, 128>}]} {
    %c1 = arith.constant 1 : index
    %c0 = arith.constant 0 : index
    %0 = vector.load %arg3[%c1, %c0] : memref<9x128xf32, #tpu.memory_space<vmem>>, vector<8x128xf32>
    %cst = arith.constant 9.800000e-01 : f32
    %1 = vector.broadcast %cst : f32 to vector<8x128xf32>
    %2 = arith.mulf %0, %1 : vector<8x128xf32>
    %c1_0 = arith.constant 1 : index
    %c0_1 = arith.constant 0 : index
    %3 = vector.load %arg5[%c1_0, %c0_1] : memref<9x128xf32, #tpu.memory_space<vmem>>, vector<8x128xf32>
    %c0_2 = arith.constant 0 : index
    %c0_3 = arith.constant 0 : index
    %4 = vector.load %arg5[%c0_2, %c0_3] : memref<9x128xf32, #tpu.memory_space<vmem>>, vector<8x128xf32>
    %c1_4 = arith.constant 1 : index
    %c0_5 = arith.constant 0 : index
    %5 = vector.load %arg1[%c1_4, %c0_5] : memref<9x128xf32, #tpu.memory_space<vmem>>, vector<8x128xf32>
    %6 = arith.mulf %2, %3 : vector<8x128xf32>
    %7 = arith.addf %5, %6 : vector<8x128xf32>
    %8 = arith.subf %7, %4 : vector<8x128xf32>
    %c0_6 = arith.constant 0 : index
    %c0_7 = arith.constant 0 : index
    %9 = vector.load %arg2[%c0_6, %c0_7] : memref<9x128xi32, #tpu.memory_space<vmem>>, vector<8x128xi32>
    %c2_i32 = arith.constant 2 : i32
    %10 = vector.broadcast %c2_i32 : i32 to vector<8x128xi32>
    %11 = arith.cmpi ne, %9, %10 : vector<8x128xi32>
    %12 = arith.extui %11 : vector<8x128xi1> to vector<8x128xi32>
    %13 = arith.sitofp %12 : vector<8x128xi32> to vector<8x128xf32>
    %14 = arith.mulf %13, %8 : vector<8x128xf32>
    %c0_8 = arith.constant 0 : index
    %c0_9 = arith.constant 0 : index
    %15 = vector.load %arg8[%c0_8, %c0_9] : memref<9x128xf32, #tpu.memory_space<vmem>>, vector<8x128xf32>
    tpu.vector_store %arg8[%c0_8, %c0_9], %14 {strides = array<i32>} : memref<9x128xf32, #tpu.memory_space<vmem>>, vector<8x128xf32>,
    %cst_10 = arith.constant 0.949999988 : f32
    %16 = vector.broadcast %cst_10 : f32 to vector<8x128xf32>
    %17 = arith.mulf %16, %13 : vector<8x128xf32>
    %18 = arith.mulf %17, %2 : vector<8x128xf32>
    %c0_11 = arith.constant 0 : index
    %c0_12 = arith.constant 0 : index
    %19 = vector.load %arg7[%c0_11, %c0_12] : memref<8x128xf32, #tpu.memory_space<vmem>>, vector<8x128xf32>
    tpu.vector_store %arg7[%c0_11, %c0_12], %18 {strides = array<i32>} : memref<8x128xf32, #tpu.memory_space<vmem>>, vector<8x128xf32>,
    %c8 = arith.constant 8 : index
    %c0_13 = arith.constant 0 : index
    %20 = vector.load %arg4[%c8, %c0_13] : memref<9x128xf32, #tpu.memory_space<vmem>>, vector<1x128xf32>
    %c8_14 = arith.constant 8 : index
    %c0_15 = arith.constant 0 : index
    %21 = vector.load %arg5[%c8_14, %c0_15] : memref<9x128xf32, #tpu.memory_space<vmem>>, vector<1x128xf32>
    %22 = arith.subf %20, %21 : vector<1x128xf32>
    %c8_16 = arith.constant 8 : index
    %c0_17 = arith.constant 0 : index
    %23 = vector.load %arg8[%c8_16, %c0_17] : memref<9x128xf32, #tpu.memory_space<vmem>>, vector<1x128xf32>
    tpu.vector_store %arg8[%c8_16, %c0_17], %22 {strides = array<i32>} : memref<9x128xf32, #tpu.memory_space<vmem>>, vector<1x128xf32>,
    %cst_18 = arith.constant 0.000000e+00 : f32
    %24 = vector.broadcast %cst_18 : f32 to vector<1x128xf32>
    %c0_i32 = arith.constant 0 : i32
    %c7_i32 = arith.constant 7 : i32
    %25 = arith.subi %c7_i32, %c0_i32 : i32
    %26 = arith.index_cast %25 : i32 to index
    %c0_19 = arith.constant 0 : index
    %27 = vector.load %arg8[%26, %c0_19] : memref<9x128xf32, #tpu.memory_space<vmem>>, vector<1x128xf32>
    %28 = arith.index_cast %25 : i32 to index
    %c0_20 = arith.constant 0 : index
    %29 = vector.load %arg7[%28, %c0_20] : memref<8x128xf32, #tpu.memory_space<vmem>>, vector<1x128xf32>
    %30 = arith.mulf %29, %24 : vector<1x128xf32>
    %31 = arith.addf %27, %30 : vector<1x128xf32>
    %32 = arith.index_cast %25 : i32 to index
    %c0_21 = arith.constant 0 : index
    %33 = vector.load %arg8[%32, %c0_21] : memref<9x128xf32, #tpu.memory_space<vmem>>, vector<1x128xf32>
    tpu.vector_store %arg8[%32, %c0_21], %31 {strides = array<i32>} : memref<9x128xf32, #tpu.memory_space<vmem>>, vector<1x128xf32>,
    %c1_i32 = arith.constant 1 : i32
    %c7_i32_22 = arith.constant 7 : i32
    %34 = arith.subi %c7_i32_22, %c1_i32 : i32
    %35 = arith.index_cast %34 : i32 to index
    %c0_23 = arith.constant 0 : index
    %36 = vector.load %arg8[%35, %c0_23] : memref<9x128xf32, #tpu.memory_space<vmem>>, vector<1x128xf32>
    %37 = arith.index_cast %34 : i32 to index
    %c0_24 = arith.constant 0 : index
    %38 = vector.load %arg7[%37, %c0_24] : memref<8x128xf32, #tpu.memory_space<vmem>>, vector<1x128xf32>
    %39 = arith.mulf %38, %31 : vector<1x128xf32>
    %40 = arith.addf %36, %39 : vector<1x128xf32>
    %41 = arith.index_cast %34 : i32 to index
    %c0_25 = arith.constant 0 : index
    %42 = vector.load %arg8[%41, %c0_25] : memref<9x128xf32, #tpu.memory_space<vmem>>, vector<1x128xf32>
    tpu.vector_store %arg8[%41, %c0_25], %40 {strides = array<i32>} : memref<9x128xf32, #tpu.memory_space<vmem>>, vector<1x128xf32>,
    %c2_i32_26 = arith.constant 2 : i32
    %c7_i32_27 = arith.constant 7 : i32
    %43 = arith.subi %c7_i32_27, %c2_i32_26 : i32
    %44 = arith.index_cast %43 : i32 to index
    %c0_28 = arith.constant 0 : index
    %45 = vector.load %arg8[%44, %c0_28] : memref<9x128xf32, #tpu.memory_space<vmem>>, vector<1x128xf32>
    %46 = arith.index_cast %43 : i32 to index
    %c0_29 = arith.constant 0 : index
    %47 = vector.load %arg7[%46, %c0_29] : memref<8x128xf32, #tpu.memory_space<vmem>>, vector<1x128xf32>
    %48 = arith.mulf %47, %40 : vector<1x128xf32>
    %49 = arith.addf %45, %48 : vector<1x128xf32>
    %50 = arith.index_cast %43 : i32 to index
    %c0_30 = arith.constant 0 : index
    %51 = vector.load %arg8[%50, %c0_30] : memref<9x128xf32, #tpu.memory_space<vmem>>, vector<1x128xf32>
    tpu.vector_store %arg8[%50, %c0_30], %49 {strides = array<i32>} : memref<9x128xf32, #tpu.memory_space<vmem>>, vector<1x128xf32>,
    %c3_i32 = arith.constant 3 : i32
    %c7_i32_31 = arith.constant 7 : i32
    %52 = arith.subi %c7_i32_31, %c3_i32 : i32
    %53 = arith.index_cast %52 : i32 to index
    %c0_32 = arith.constant 0 : index
    %54 = vector.load %arg8[%53, %c0_32] : memref<9x128xf32, #tpu.memory_space<vmem>>, vector<1x128xf32>
    %55 = arith.index_cast %52 : i32 to index
    %c0_33 = arith.constant 0 : index
    %56 = vector.load %arg7[%55, %c0_33] : memref<8x128xf32, #tpu.memory_space<vmem>>, vector<1x128xf32>
    %57 = arith.mulf %56, %49 : vector<1x128xf32>
    %58 = arith.addf %54, %57 : vector<1x128xf32>
    %59 = arith.index_cast %52 : i32 to index
    %c0_34 = arith.constant 0 : index
    %60 = vector.load %arg8[%59, %c0_34] : memref<9x128xf32, #tpu.memory_space<vmem>>, vector<1x128xf32>
    tpu.vector_store %arg8[%59, %c0_34], %58 {strides = array<i32>} : memref<9x128xf32, #tpu.memory_space<vmem>>, vector<1x128xf32>,
    %c4_i32 = arith.constant 4 : i32
    %c7_i32_35 = arith.constant 7 : i32
    %61 = arith.subi %c7_i32_35, %c4_i32 : i32
    %62 = arith.index_cast %61 : i32 to index
    %c0_36 = arith.constant 0 : index
    %63 = vector.load %arg8[%62, %c0_36] : memref<9x128xf32, #tpu.memory_space<vmem>>, vector<1x128xf32>
    %64 = arith.index_cast %61 : i32 to index
    %c0_37 = arith.constant 0 : index
    %65 = vector.load %arg7[%64, %c0_37] : memref<8x128xf32, #tpu.memory_space<vmem>>, vector<1x128xf32>
    %66 = arith.mulf %65, %58 : vector<1x128xf32>
    %67 = arith.addf %63, %66 : vector<1x128xf32>
    %68 = arith.index_cast %61 : i32 to index
    %c0_38 = arith.constant 0 : index
    %69 = vector.load %arg8[%68, %c0_38] : memref<9x128xf32, #tpu.memory_space<vmem>>, vector<1x128xf32>
    tpu.vector_store %arg8[%68, %c0_38], %67 {strides = array<i32>} : memref<9x128xf32, #tpu.memory_space<vmem>>, vector<1x128xf32>,
    %c5_i32 = arith.constant 5 : i32
    %c7_i32_39 = arith.constant 7 : i32
    %70 = arith.subi %c7_i32_39, %c5_i32 : i32
    %71 = arith.index_cast %70 : i32 to index
    %c0_40 = arith.constant 0 : index
    %72 = vector.load %arg8[%71, %c0_40] : memref<9x128xf32, #tpu.memory_space<vmem>>, vector<1x128xf32>
    %73 = arith.index_cast %70 : i32 to index
    %c0_41 = arith.constant 0 : index
    %74 = vector.load %arg7[%73, %c0_41] : memref<8x128xf32, #tpu.memory_space<vmem>>, vector<1x128xf32>
    %75 = arith.mulf %74, %67 : vector<1x128xf32>
    %76 = arith.addf %72, %75 : vector<1x128xf32>
    %77 = arith.index_cast %70 : i32 to index
    %c0_42 = arith.constant 0 : index
    %78 = vector.load %arg8[%77, %c0_42] : memref<9x128xf32, #tpu.memory_space<vmem>>, vector<1x128xf32>
    tpu.vector_store %arg8[%77, %c0_42], %76 {strides = array<i32>} : memref<9x128xf32, #tpu.memory_space<vmem>>, vector<1x128xf32>,
    %c6_i32 = arith.constant 6 : i32
    %c7_i32_43 = arith.constant 7 : i32
    %79 = arith.subi %c7_i32_43, %c6_i32 : i32
    %80 = arith.index_cast %79 : i32 to index
    %c0_44 = arith.constant 0 : index
    %81 = vector.load %arg8[%80, %c0_44] : memref<9x128xf32, #tpu.memory_space<vmem>>, vector<1x128xf32>
    %82 = arith.index_cast %79 : i32 to index
    %c0_45 = arith.constant 0 : index
    %83 = vector.load %arg7[%82, %c0_45] : memref<8x128xf32, #tpu.memory_space<vmem>>, vector<1x128xf32>
    %84 = arith.mulf %83, %76 : vector<1x128xf32>
    %85 = arith.addf %81, %84 : vector<1x128xf32>
    %86 = arith.index_cast %79 : i32 to index
    %c0_46 = arith.constant 0 : index
    %87 = vector.load %arg8[%86, %c0_46] : memref<9x128xf32, #tpu.memory_space<vmem>>, vector<1x128xf32>
    tpu.vector_store %arg8[%86, %c0_46], %85 {strides = array<i32>} : memref<9x128xf32, #tpu.memory_space<vmem>>, vector<1x128xf32>,
    %c7_i32_47 = arith.constant 7 : i32
    %c7_i32_48 = arith.constant 7 : i32
    %88 = arith.subi %c7_i32_48, %c7_i32_47 : i32
    %89 = arith.index_cast %88 : i32 to index
    %c0_49 = arith.constant 0 : index
    %90 = vector.load %arg8[%89, %c0_49] : memref<9x128xf32, #tpu.memory_space<vmem>>, vector<1x128xf32>
    %91 = arith.index_cast %88 : i32 to index
    %c0_50 = arith.constant 0 : index
    %92 = vector.load %arg7[%91, %c0_50] : memref<8x128xf32, #tpu.memory_space<vmem>>, vector<1x128xf32>
    %93 = arith.mulf %92, %85 : vector<1x128xf32>
    %94 = arith.addf %90, %93 : vector<1x128xf32>
    %95 = arith.index_cast %88 : i32 to index
    %c0_51 = arith.constant 0 : index
    %96 = vector.load %arg8[%95, %c0_51] : memref<9x128xf32, #tpu.memory_space<vmem>>, vector<1x128xf32>
    tpu.vector_store %arg8[%95, %c0_51], %94 {strides = array<i32>} : memref<9x128xf32, #tpu.memory_space<vmem>>, vector<1x128xf32>,
    %c8_i32 = arith.constant 8 : i32
    %c0_52 = arith.constant 0 : index
    %c0_53 = arith.constant 0 : index
    %97 = vector.load %arg8[%c0_52, %c0_53] : memref<9x128xf32, #tpu.memory_space<vmem>>, vector<9x128xf32>
    %c0_54 = arith.constant 0 : index
    %c0_55 = arith.constant 0 : index
    %98 = vector.load %arg5[%c0_54, %c0_55] : memref<9x128xf32, #tpu.memory_space<vmem>>, vector<9x128xf32>
    %99 = arith.addf %97, %98 : vector<9x128xf32>
    %c0_56 = arith.constant 0 : index
    %c0_57 = arith.constant 0 : index
    %100 = vector.load %arg4[%c0_56, %c0_57] : memref<9x128xf32, #tpu.memory_space<vmem>>, vector<9x128xf32>
    %101 = arith.subf %99, %100 : vector<9x128xf32>
    %102 = arith.mulf %101, %101 : vector<9x128xf32>
    %c0_58 = arith.constant 0 : index
    %c0_59 = arith.constant 0 : index
    %103 = vector.load %arg6[%c0_58, %c0_59] : memref<9x128xf32, #tpu.memory_space<vmem>>, vector<9x128xf32>
    tpu.vector_store %arg6[%c0_58, %c0_59], %102 {strides = array<i32>} : memref<9x128xf32, #tpu.memory_space<vmem>>, vector<9x128xf32>,
    return
  }
  func.func @transform_0(%arg0: i32) -> (i32, i32) {
    %c0_i32 = arith.constant 0 : i32
    %c0_i32_0 = arith.constant 0 : i32
    return %c0_i32, %arg0 : i32, i32
  }
  func.func @transform_1(%arg0: i32) -> (i32, i32) {
    %c0_i32 = arith.constant 0 : i32
    %c0_i32_0 = arith.constant 0 : i32
    return %c0_i32, %arg0 : i32, i32
  }
  func.func @transform_2(%arg0: i32) -> (i32, i32) {
    %c0_i32 = arith.constant 0 : i32
    %c0_i32_0 = arith.constant 0 : i32
    return %c0_i32, %arg0 : i32, i32
  }
  func.func @transform_3(%arg0: i32) -> (i32, i32) {
    %c0_i32 = arith.constant 0 : i32
    %c0_i32_0 = arith.constant 0 : i32
    return %c0_i32, %arg0 : i32, i32
  }
  func.func @transform_4(%arg0: i32) -> (i32, i32) {
    %c0_i32 = arith.constant 0 : i32
    %c0_i32_0 = arith.constant 0 : i32
    return %c0_i32, %arg0 : i32, i32
  }
  func.func @transform_5(%arg0: i32) -> (i32, i32) {
    %c0_i32 = arith.constant 0 : i32
    %c0_i32_0 = arith.constant 0 : i32
    return %c0_i32, %arg0 : i32, i32
  }
}

</mosaic_0001>

<llo_original>
// kernel: tpu_custom_call.1
$region0: #{tpu_custom_call.1}
  #allocation0 [shape = 'u32[]', space=smem, size = 0x4, offset = 0x4, fixed_abs, tag = 'smem constant byte address 0x4 - core index']
  #allocation1 [shape = 'u32[72,128]{1,0:T(1,128)}', space=vmem, size = 0x9000, scoped, tag = 'internal scratch']
  #allocation2 [shape = 'f32[8,128]{1,0:T(8,128)}', space=vmem, size = 0x1000, scoped, tag = 'scratch operand']
  #allocation3 [shape = 'f32[9,128]{1,0:T(8,128)}', space=vmem, size = 0x2000, scoped, tag = 'scratch operand']
  %s0 = inlined_call_operand.hbm [shape: f32[9,128], index: 0, kind: input, shape index: {}]
  %s1 = inlined_call_operand.hbm [shape: s32[9,128], index: 1, kind: input, shape index: {}]
  %s2 = inlined_call_operand.hbm [shape: f32[9,128], index: 2, kind: input, shape index: {}]
  %s3 = inlined_call_operand.hbm [shape: f32[9,128], index: 3, kind: input, shape index: {}]
  %s4 = inlined_call_operand.hbm [shape: f32[9,128], index: 4, kind: input, shape index: {}]
  %s5 = inlined_call_operand.hbm [shape: f32[9,128], index: 5, kind: output, shape index: {}]
  %s6 = sld [smem:[#allocation0]]
  $region50: #{tpu_custom_call.1} parent=0
    _
  %s8 = ssub.s32 1, %s6
  %s9 = scalar_select 0, %s8, %s6
  $region1: #{tpu_custom_call.1} parent=0
    #allocation4 [shape = 'u8[8192]{0}', space=vmem, size = 0x2000, scoped, tag = 'input window, operand 0, single buffered']
    #allocation5 [shape = 's32[1]{0}', space=sflag, size = 0x4, scoped, tag = 'scoped memory for tpu_custom_call.1']
    #allocation6 [shape = 's32[1]{0}', space=sflag, size = 0x4, scoped, tag = 'scoped memory for tpu_custom_call.1']
    #allocation7 [shape = 'u8[8192]{0}', space=vmem, size = 0x2000, scoped, tag = 'input window, operand 1, single buffered']
    #allocation8 [shape = 's32[1]{0}', space=sflag, size = 0x4, scoped, tag = 'scoped memory for tpu_custom_call.1']
    #allocation9 [shape = 'u8[8192]{0}', space=vmem, size = 0x2000, scoped, tag = 'input window, operand 2, single buffered']
    #allocation10 [shape = 'u8[8192]{0}', space=vmem, size = 0x2000, scoped, tag = 'input window, operand 3, single buffered']
    #allocation11 [shape = 's32[1]{0}', space=sflag, size = 0x4, scoped, tag = 'scoped memory for tpu_custom_call.1']
    #allocation12 [shape = 'u8[8192]{0}', space=vmem, size = 0x2000, scoped, tag = 'input window, operand 4, single buffered']
    #allocation13 [shape = 'u8[8192]{0}', space=vmem, size = 0x2000, scoped, tag = 'output window, operand 0, single buffered']
    %10 = vsyncpa [#allocation5], 0
    %11 = vsyncpa [#allocation8], 0
    %12 = vsyncpa [#allocation11], 0
    %13 = vsyncpa [#allocation6], 0
    // Predicated region
    $region2: #{tpu_custom_call.1} parent=1 // pred_check
      _
    $region3: #{tpu_custom_call.1} parent=1 // pred_check_branch
      %15 = sbr.rel (0) target = $region5
    $region4: #{tpu_custom_call.1} parent=1 // pred_region
      %17 = vsyncadd [#allocation5], 0
      %s18 = sshll.u32 %s0, 4
      %s19 = int_to_ptr.hbm [resolvable:$true] %s18
      %s20 = sshll.u32 [#allocation4], 4
      %s21 = int_to_ptr.vmem [resolvable:$true] %s20
      %26 = dma.hbm_to_vmem [thread:$0]  %s19, 256, %s21, [#allocation5], 128, 128, 8
    $region5: #{tpu_custom_call.1} parent=1 // pred_fallthru
      _
    // Predicated region
    $region6: #{tpu_custom_call.1} parent=1 // pred_check
      _
    $region7: #{tpu_custom_call.1} parent=1 // pred_check_branch
      %28 = sbr.rel (0) target = $region9
    $region8: #{tpu_custom_call.1} parent=1 // pred_region
      %30 = vsyncadd [#allocation8], 0
      %s31 = sshll.u32 %s1, 4
      %s32 = int_to_ptr.hbm [resolvable:$true] %s31
      %s33 = sshll.u32 [#allocation7], 4
      %s34 = int_to_ptr.vmem [resolvable:$true] %s33
      %39 = dma.hbm_to_vmem [thread:$0]  %s32, 256, %s34, [#allocation8], 128, 128, 8
    $region9: #{tpu_custom_call.1} parent=1 // pred_fallthru
      _
    // Predicated region
    $region10: #{tpu_custom_call.1} parent=1 // pred_check
      _
    $region11: #{tpu_custom_call.1} parent=1 // pred_check_branch
      %41 = sbr.rel (0) target = $region13
    $region12: #{tpu_custom_call.1} parent=1 // pred_region
      %43 = vsyncadd [#allocation8], 0
      %s44 = sshll.u32 %s2, 4
      %s45 = int_to_ptr.hbm [resolvable:$true] %s44
      %s46 = sshll.u32 [#allocation9], 4
      %s47 = int_to_ptr.vmem [resolvable:$true] %s46
      %52 = dma.hbm_to_vmem [thread:$0]  %s45, 256, %s47, [#allocation8], 128, 128, 8
    $region13: #{tpu_custom_call.1} parent=1 // pred_fallthru
      _
    // Predicated region
    $region14: #{tpu_custom_call.1} parent=1 // pred_check
      _
    $region15: #{tpu_custom_call.1} parent=1 // pred_check_branch
      %54 = sbr.rel (0) target = $region17
    $region16: #{tpu_custom_call.1} parent=1 // pred_region
      %56 = vsyncadd [#allocation11], 0
      %s57 = sshll.u32 %s3, 4
      %s58 = int_to_ptr.hbm [resolvable:$true] %s57
      %s59 = sshll.u32 [#allocation10], 4
      %s60 = int_to_ptr.vmem [resolvable:$true] %s59
      %65 = dma.hbm_to_vmem [thread:$0]  %s58, 256, %s60, [#allocation11], 128, 128, 8
    $region17: #{tpu_custom_call.1} parent=1 // pred_fallthru
      _
    // Predicated region
    $region18: #{tpu_custom_call.1} parent=1 // pred_check
      _
    $region19: #{tpu_custom_call.1} parent=1 // pred_check_branch
      %67 = sbr.rel (0) target = $region21
    $region20: #{tpu_custom_call.1} parent=1 // pred_region
      %69 = vsyncadd [#allocation11], 0
      %s70 = sshll.u32 %s4, 4
      %s71 = int_to_ptr.hbm [resolvable:$true] %s70
      %s72 = sshll.u32 [#allocation12], 4
      %s73 = int_to_ptr.vmem [resolvable:$true] %s72
      %78 = dma.hbm_to_vmem [thread:$0]  %s71, 256, %s73, [#allocation11], 128, 128, 8
    $region21: #{tpu_custom_call.1} parent=1 // pred_fallthru
      _
    // Predicated region
    $region22: #{tpu_custom_call.1} parent=1 // pred_check
      _
    $region23: #{tpu_custom_call.1} parent=1 // pred_check_branch
      %80 = sbr.rel (0) target = $region25
    $region24: #{tpu_custom_call.1} parent=1 // pred_region
      %82 = dma.done [#allocation5], 256
    $region25: #{tpu_custom_call.1} parent=1 // pred_fallthru
      _
    // Predicated region
    $region26: #{tpu_custom_call.1} parent=1 // pred_check
      _
    $region27: #{tpu_custom_call.1} parent=1 // pred_check_branch
      %84 = sbr.rel (0) target = $region29
    $region28: #{tpu_custom_call.1} parent=1 // pred_region
      %86 = dma.done [#allocation8], 256
    $region29: #{tpu_custom_call.1} parent=1 // pred_fallthru
      _
    // Predicated region
    $region30: #{tpu_custom_call.1} parent=1 // pred_check
      _
    $region31: #{tpu_custom_call.1} parent=1 // pred_check_branch
      %88 = sbr.rel (0) target = $region33
    $region32: #{tpu_custom_call.1} parent=1 // pred_region
      %90 = dma.done [#allocation8], 256
    $region33: #{tpu_custom_call.1} parent=1 // pred_fallthru
      _
    // Predicated region
    $region34: #{tpu_custom_call.1} parent=1 // pred_check
      _
    $region35: #{tpu_custom_call.1} parent=1 // pred_check_branch
      %92 = sbr.rel (0) target = $region37
    $region36: #{tpu_custom_call.1} parent=1 // pred_region
      %94 = dma.done [#allocation11], 256
    $region37: #{tpu_custom_call.1} parent=1 // pred_fallthru
      _
    // Predicated region
    $region38: #{tpu_custom_call.1} parent=1 // pred_check
      _
    $region39: #{tpu_custom_call.1} parent=1 // pred_check_branch
      %96 = sbr.rel (0) target = $region41
    $region40: #{tpu_custom_call.1} parent=1 // pred_region
      %98 = dma.done [#allocation11], 256
    $region41: #{tpu_custom_call.1} parent=1 // pred_fallthru
      _
    %v99 = vld [vmem:[#allocation9 + $0x1] sm:$0xff]
    %v100 = vmul.f32 %v99, 0.98
    %v101 = vld [vmem:[#allocation12 + $0x1] sm:$0xff]
    %v102 = vld [vmem:[#allocation12] sm:$0xff]
    %v103 = vld [vmem:[#allocation4 + $0x1] sm:$0xff]
    %v104 = vmul.f32 %v100, %v101
    %v105 = vadd.f32 %v103, %v104
    %v106 = vsub.f32 %v105, %v102
    %v107 = vld [vmem:[#allocation7] sm:$0xff]
    %vm108 = vcmp.ne.s32.totalorder %v107, 2
    %v109 = vsel %vm108, 1, 0
    %v110 = vcvt.s32.f32 %v109
    %v111 = vmul.f32 %v110, %v106
    %112 = vst [vmem:[#allocation3] sm:$0xff] %v111
    %v113 = vmul.f32 %v110, 0.95
    %v114 = vmul.f32 %v113, %v100
    %115 = vst [vmem:[#allocation2] sm:$0xff] %v114
    %v116 = vld [vmem:[#allocation10 + $0x8] sm:$0x1]
    %v117 = vld [vmem:[#allocation12 + $0x8] sm:$0x1]
    %v118 = vsub.f32 %v116, %v117
    %119 = vst [vmem:[#allocation3 + $0x8] sm:$0x1] %v118
    %v120 = vld [vmem:[#allocation3 + $0x7] sm:$0x1]
    %v121 = vld [vmem:[#allocation2 + $0x7] sm:$0x1]
    %v122 = vmul.f32 %v121, 0.0
    %v123 = vadd.f32 %v120, %v122
    %124 = vst [vmem:[#allocation3 + $0x7] sm:$0x1] %v123
    %v125 = vld [vmem:[#allocation3 + $0x6] sm:$0x1]
    %v126 = vld [vmem:[#allocation2 + $0x6] sm:$0x1]
    %v127 = vmul.f32 %v126, %v123
    %v128 = vadd.f32 %v125, %v127
    %129 = vst [vmem:[#allocation3 + $0x6] sm:$0x1] %v128
    %v130 = vld [vmem:[#allocation3 + $0x5] sm:$0x1]
    %v131 = vld [vmem:[#allocation2 + $0x5] sm:$0x1]
    %v132 = vmul.f32 %v131, %v128
    %v133 = vadd.f32 %v130, %v132
    %134 = vst [vmem:[#allocation3 + $0x5] sm:$0x1] %v133
    %v135 = vld [vmem:[#allocation3 + $0x4] sm:$0x1]
    %v136 = vld [vmem:[#allocation2 + $0x4] sm:$0x1]
    %v137 = vmul.f32 %v136, %v133
    %v138 = vadd.f32 %v135, %v137
    %139 = vst [vmem:[#allocation3 + $0x4] sm:$0x1] %v138
    %v140 = vld [vmem:[#allocation3 + $0x3] sm:$0x1]
    %v141 = vld [vmem:[#allocation2 + $0x3] sm:$0x1]
    %v142 = vmul.f32 %v141, %v138
    %v143 = vadd.f32 %v140, %v142
    %144 = vst [vmem:[#allocation3 + $0x3] sm:$0x1] %v143
    %v145 = vld [vmem:[#allocation3 + $0x2] sm:$0x1]
    %v146 = vld [vmem:[#allocation2 + $0x2] sm:$0x1]
    %v147 = vmul.f32 %v146, %v143
    %v148 = vadd.f32 %v145, %v147
    %149 = vst [vmem:[#allocation3 + $0x2] sm:$0x1] %v148
    %v150 = vld [vmem:[#allocation3 + $0x1] sm:$0x1]
    %v151 = vld [vmem:[#allocation2 + $0x1] sm:$0x1]
    %v152 = vmul.f32 %v151, %v148
    %v153 = vadd.f32 %v150, %v152
    %154 = vst [vmem:[#allocation3 + $0x1] sm:$0x1] %v153
    %v155 = vld [vmem:[#allocation3] sm:$0x1]
    %v156 = vld [vmem:[#allocation2] sm:$0x1]
    %v157 = vmul.f32 %v156, %v153
    %v158 = vadd.f32 %v155, %v157
    %159 = vst [vmem:[#allocation3] sm:$0x1] %v158
    %v160 = vld [vmem:[#allocation3] sm:$0xff]
    %v161 = vld [vmem:[#allocation3 + $0x8] sm:$0x1]
    %v162 = vld [vmem:[#allocation12] sm:$0xff]
    %v163 = vld [vmem:[#allocation12 + $0x8] sm:$0x1]
    %v164 = vadd.f32 %v160, %v162
    %v165 = vadd.f32 %v161, %v163
    %v166 = vld [vmem:[#allocation10] sm:$0xff]
    %v167 = vld [vmem:[#allocation10 + $0x8] sm:$0x1]
    %v168 = vsub.f32 %v164, %v166
    %v169 = vsub.f32 %v165, %v167
    %v170 = vmul.f32 %v168, %v168
    %v171 = vmul.f32 %v169, %v169
    %172 = vst [vmem:[#allocation13] sm:$0xff] %v170
    %173 = vst [vmem:[#allocation13 + $0x8] sm:$0x1] %v171
    // Predicated region
    $region42: #{tpu_custom_call.1} parent=1 // pred_check
      _
    $region43: #{tpu_custom_call.1} parent=1 // pred_check_branch
      %175 = sbr.rel (0) target = $region45
    $region44: #{tpu_custom_call.1} parent=1 // pred_region
      %177 = vsyncadd [#allocation6], 0
      %s178 = sshll.u32 [#allocation13], 4
      %s179 = int_to_ptr.vmem [resolvable:$true] %s178
      %s180 = sshll.u32 %s5, 4
      %s181 = int_to_ptr.hbm [resolvable:$true] %s180
      %186 = dma.vmem_to_hbm [thread:$0]  %s179, 256, %s181, [#allocation6], 128, 128, 8
    $region45: #{tpu_custom_call.1} parent=1 // pred_fallthru
      _
    // Predicated region
    $region46: #{tpu_custom_call.1} parent=1 // pred_check
      _
    $region47: #{tpu_custom_call.1} parent=1 // pred_check_branch
      %188 = sbr.rel (0) target = $region49
    $region48: #{tpu_custom_call.1} parent=1 // pred_region
      %190 = dma.done [#allocation6], 256
    $region49: #{tpu_custom_call.1} parent=1 // pred_fallthru
      _
    %191 = vsyncpa [#allocation5], 1
    %192 = vsyncpa [#allocation8], 1
    %193 = vsyncpa [#allocation11], 1
    %194 = vsyncpa [#allocation6], 1

</llo_original>
